<compile_context>
chip_gen: v7x
topology: tpu7x:2x2x1
jax: 0.10.0
libtpu: 0.0.40
codegen_flags: <defaults>
</compile_context>

<pallas_src>
import functools

import jax
import jax.numpy as jnp
from jax import lax
from jax.experimental import pallas as pl
from jax.experimental.pallas import tpu as pltpu

NUM_CLASSES = 5
C_PAD = 128  # lane-dense class axis (pad 5 -> 128)


def _round_up(x, m):
    return (x + m - 1) // m * m


# ----------------------------- kernels ------------------------------------ #

def linear_kernel(x_ref, w_ref, b_ref, out_ref):
    """Logits = x @ W^T + b, accumulated over the K grid axis directly in the
    float32 output block (block index constant across k => resident in VMEM)."""
    k = pl.program_id(1)

    @pl.when(k == 0)
    def _():
        out_ref[...] = jnp.zeros_like(out_ref)

    out_ref[...] += lax.dot_general(
        x_ref[...], w_ref[...],
        dimension_numbers=(((1,), (1,)), ((), ())),  # contract K with K (W untransposed)
        preferred_element_type=jnp.float32)

    @pl.when(k == pl.num_programs(1) - 1)
    def _():
        out_ref[...] += b_ref[...]


def linear_ce_kernel(x_ref, w_ref, b_ref, y_ref, loss_ref, acc_ref, *, batch, tm):
    """Fused linear + softmax cross-entropy (class-index targets).

    Writes the per-batch-tile SUM of per-example losses; the wrapper divides by
    batch for reduction='mean'. Padded class columns and padded batch rows are
    masked out. All epilogue math is float32 (v5e has no bf16 VPU/EUP path)."""
    i = pl.program_id(0)
    k = pl.program_id(1)

    @pl.when(k == 0)
    def _():
        acc_ref[...] = jnp.zeros_like(acc_ref)

    acc_ref[...] += lax.dot_general(
        x_ref[...], w_ref[...],
        dimension_numbers=(((1,), (1,)), ((), ())),
        preferred_element_type=jnp.float32)

    @pl.when(k == pl.num_programs(1) - 1)
    def _():
        logits = acc_ref[...] + b_ref[...]                       # (TM, C_PAD) f32

        # Mask padded class columns out of the logsumexp.
        cls = lax.broadcasted_iota(jnp.int32, logits.shape, 1)
        col_valid = cls < NUM_CLASSES
        masked = jnp.where(col_valid, logits, -1e30)

        m = jnp.max(masked, axis=-1, keepdims=True)
        lse = jnp.log(jnp.sum(jnp.exp(masked - m), axis=-1, keepdims=True)) + m

        # One-hot gather of the target-class logit (no dynamic gather on TPU).
        y = y_ref[...]                                           # (TM, 1) int32
        onehot = jnp.logical_and(cls == y, col_valid).astype(jnp.float32)
        tgt = jnp.sum(onehot * logits, axis=-1, keepdims=True)

        # Mask batch-padding rows; emit per-tile partial sum.
        rows = lax.broadcasted_iota(jnp.int32, (tm, 1), 0) + i * tm
        per_row = jnp.where(rows < batch, lse - tgt, 0.0)
        # TODO(synk): (1,1) loss block stays a tiny masked VMEM store; an SMEM
        # out_spec would be the further micro-opt.
        loss_ref[0, 0] = jnp.sum(per_row)


# ----------------------------- wrappers ------------------------------------ #

def _tiles(batch, in_features):
    tm = min(512, _round_up(batch, 8))
    batch_pad = _round_up(batch, tm)
    if in_features > 512 and in_features % 512 == 0:
        tk = 512
    elif in_features > 128 and in_features % 128 == 0:
        tk = 128
    else:
        tk = in_features  # whole-K block (must equal the full dim when not 128-aligned)
    return tm, batch_pad, tk


def _pad_inputs(x, w, b, batch, batch_pad, in_features):
    # Zero-pad class axis to C_PAD (zeros keep the matmul exact) and batch to batch_pad.
    x_bf = jnp.zeros((batch_pad, in_features), jnp.bfloat16).at[:batch].set(
        x.astype(jnp.bfloat16))
    w_bf = jnp.zeros((C_PAD, in_features), jnp.bfloat16).at[:NUM_CLASSES].set(
        w.astype(jnp.bfloat16))
    b_f32 = jnp.zeros((1, C_PAD), jnp.float32).at[0, :NUM_CLASSES].set(
        b.astype(jnp.float32))
    return x_bf, w_bf, b_f32


def multiclass_forward(x, w, b, y=None):
    """Mirrors MultiClassModel.forward: logits if y is None, else mean CE loss."""
    batch, in_features = x.shape
    tm, batch_pad, tk = _tiles(batch, in_features)
    n_bt = batch_pad // tm
    n_kt = in_features // tk

    x_bf, w_bf, b_f32 = _pad_inputs(x, w, b, batch, batch_pad, in_features)

    common_in_specs = [
        pl.BlockSpec((tm, tk), lambda i, k: (i, k)),        # x tile
        pl.BlockSpec((C_PAD, tk), lambda i, k: (0, k)),     # padded W (untransposed)
        pl.BlockSpec((1, C_PAD), lambda i, k: (0, 0)),      # padded bias
    ]
    cparams = pltpu.CompilerParams(
        dimension_semantics=("parallel", "arbitrary"))

    if y is None:
        out = pl.pallas_call(
            linear_kernel,
            out_shape=jax.ShapeDtypeStruct((batch_pad, C_PAD), jnp.float32),
            grid=(n_bt, n_kt),
            in_specs=common_in_specs,
            out_specs=pl.BlockSpec((tm, C_PAD), lambda i, k: (i, 0)),
            compiler_params=cparams,
        )(x_bf, w_bf, b_f32)
        return out[:batch, :NUM_CLASSES]

    y_pad = jnp.zeros((batch_pad, 1), jnp.int32).at[:batch, 0].set(y.astype(jnp.int32))
    kernel = functools.partial(linear_ce_kernel, batch=batch, tm=tm)
    partials = pl.pallas_call(
        kernel,
        out_shape=jax.ShapeDtypeStruct((n_bt, 1), jnp.float32),
        grid=(n_bt, n_kt),
        in_specs=common_in_specs + [
            pl.BlockSpec((tm, 1), lambda i, k: (i, 0)),     # class-index labels
        ],
        out_specs=pl.BlockSpec((1, 1), lambda i, k: (i, 0)),
        scratch_shapes=[pltpu.VMEM((tm, C_PAD), jnp.float32)],
        compiler_params=cparams,
    )(x_bf, w_bf, b_f32, y_pad)
    return jnp.sum(partials) / batch                          # reduction='mean'


# ----------------------------- main ----------------------------------------- #

if __name__ == "__main__":
    batch = 8
    input_size = 32

    key = jax.random.PRNGKey(0)
    kx, kw, kb, ky = jax.random.split(key, 4)

    # deterministic params, matching nn.Linear's default U(-1/sqrt(D), 1/sqrt(D))
    bound = 1.0 / jnp.sqrt(jnp.float32(input_size))
    w = jax.random.uniform(kw, (NUM_CLASSES, input_size), jnp.float32, -bound, bound)
    b = jax.random.uniform(kb, (NUM_CLASSES,), jnp.float32, -bound, bound)

    x = jax.random.normal(kx, (batch, input_size), jnp.float32)
    y = jax.random.randint(ky, (batch,), 0, NUM_CLASSES, jnp.int32)

    # inference path: logits
    logits = jax.block_until_ready(multiclass_forward(x, w, b))
    # training path: mean cross-entropy loss
    loss = jax.block_until_ready(multiclass_forward(x, w, b, y))

    # sanity check against a pure-JAX reference with the same bf16 matmul inputs
    xb = x.astype(jnp.bfloat16).astype(jnp.float32)
    wb = w.astype(jnp.bfloat16).astype(jnp.float32)
    ref_logits = xb @ wb.T + b
    ref_loss = jnp.mean(
        jax.nn.logsumexp(ref_logits, axis=-1)
        - jnp.take_along_axis(ref_logits, y[:, None], axis=-1)[:, 0]
    )
    assert logits.shape == (batch, NUM_CLASSES)
    assert jnp.allclose(logits, ref_logits, atol=1e-4, rtol=1e-4)
    assert jnp.allclose(loss, ref_loss, atol=1e-4, rtol=1e-4)

    print("KERNEL_OK")
</pallas_src>

<mosaic_0001>
module attributes {stable_mosaic.version = 11 : i64} {
  func.func @linear_kernel(%arg0: i32, %arg1: i32, %arg2: memref<8x32xbf16, #tpu.memory_space<vmem>>, %arg3: memref<128x32xbf16, #tpu.memory_space<vmem>>, %arg4: memref<1x128xf32, #tpu.memory_space<vmem>>, %arg5: memref<8x128xf32, #tpu.memory_space<vmem>>) attributes {dimension_semantics = [#tpu.dimension_semantics<parallel>, #tpu.dimension_semantics<arbitrary>], iteration_bounds = array<i64: 1, 1>, scalar_prefetch = 0 : i64, scratch_operands = 0 : i64, tpu.core_type = #tpu.core_type<tc>, window_params = [{transform_indices = @transform_0, window_bounds = array<i64: 8, 32>}, {transform_indices = @transform_1, window_bounds = array<i64: 128, 32>}, {pipeline_mode = #tpu.pipeline_mode<synchronous>, transform_indices = @transform_2, window_bounds = array<i64: 1, 128>}, {transform_indices = @transform_3, window_bounds = array<i64: 8, 128>}]} {
    %c0_i32 = arith.constant 0 : i32
    %0 = arith.cmpi eq, %arg1, %c0_i32 : i32
    %1 = arith.extui %0 : i1 to i32
    %c0_i32_0 = arith.constant 0 : i32
    %2 = arith.cmpi ne, %1, %c0_i32_0 : i32
    scf.if %2 {
      %cst_10 = arith.constant 0.000000e+00 : f32
      %12 = vector.broadcast %cst_10 : f32 to vector<8x128xf32>
      %c0_11 = arith.constant 0 : index
      %c0_12 = arith.constant 0 : index
      %13 = vector.load %arg5[%c0_11, %c0_12] : memref<8x128xf32, #tpu.memory_space<vmem>>, vector<8x128xf32>
      tpu.vector_store %arg5[%c0_11, %c0_12], %12 {strides = array<i32>} : memref<8x128xf32, #tpu.memory_space<vmem>>, vector<8x128xf32>,
    } else {
    }
    %c0 = arith.constant 0 : index
    %c0_1 = arith.constant 0 : index
    %3 = vector.load %arg5[%c0, %c0_1] : memref<8x128xf32, #tpu.memory_space<vmem>>, vector<8x128xf32>
    %c0_2 = arith.constant 0 : index
    %c0_3 = arith.constant 0 : index
    %4 = vector.load %arg2[%c0_2, %c0_3] : memref<8x32xbf16, #tpu.memory_space<vmem>>, vector<8x32xbf16>
    %c0_4 = arith.constant 0 : index
    %c0_5 = arith.constant 0 : index
    %5 = vector.load %arg3[%c0_4, %c0_5] : memref<128x32xbf16, #tpu.memory_space<vmem>>, vector<128x32xbf16>
    %cst = arith.constant dense<0.000000e+00> : vector<8x128xf32>
    %6 = tpu.matmul %4, %5, %cst {dimension_numbers = #tpu.dot_dimension_numbers<[1], [1], [0], [0], [0, 0, 1, 0], [], []>} : vector<8x32xbf16>, vector<128x32xbf16>, vector<8x128xf32> -> vector<8x128xf32>
    %7 = arith.addf %3, %6 : vector<8x128xf32>
    %c0_6 = arith.constant 0 : index
    %c0_7 = arith.constant 0 : index
    %8 = vector.load %arg5[%c0_6, %c0_7] : memref<8x128xf32, #tpu.memory_space<vmem>>, vector<8x128xf32>
    tpu.vector_store %arg5[%c0_6, %c0_7], %7 {strides = array<i32>} : memref<8x128xf32, #tpu.memory_space<vmem>>, vector<8x128xf32>,
    %c0_i32_8 = arith.constant 0 : i32
    %9 = arith.cmpi eq, %arg1, %c0_i32_8 : i32
    %10 = arith.extui %9 : i1 to i32
    %c0_i32_9 = arith.constant 0 : i32
    %11 = arith.cmpi ne, %10, %c0_i32_9 : i32
    scf.if %11 {
      %c0_10 = arith.constant 0 : index
      %c0_11 = arith.constant 0 : index
      %12 = vector.load %arg5[%c0_10, %c0_11] : memref<8x128xf32, #tpu.memory_space<vmem>>, vector<8x128xf32>
      %c0_12 = arith.constant 0 : index
      %c0_13 = arith.constant 0 : index
      %13 = vector.load %arg4[%c0_12, %c0_13] : memref<1x128xf32, #tpu.memory_space<vmem>>, vector<1x128xf32>
      %14 = vector.broadcast %13 : vector<1x128xf32> to vector<8x128xf32>
      %15 = arith.addf %12, %14 : vector<8x128xf32>
      %c0_14 = arith.constant 0 : index
      %c0_15 = arith.constant 0 : index
      %16 = vector.load %arg5[%c0_14, %c0_15] : memref<8x128xf32, #tpu.memory_space<vmem>>, vector<8x128xf32>
      tpu.vector_store %arg5[%c0_14, %c0_15], %15 {strides = array<i32>} : memref<8x128xf32, #tpu.memory_space<vmem>>, vector<8x128xf32>,
    } else {
    }
    return
  }
  func.func @transform_0(%arg0: i32, %arg1: i32) -> (i32, i32) {
    %c0_i32 = arith.constant 0 : i32
    return %arg0, %arg1 : i32, i32
  }
  func.func @transform_1(%arg0: i32, %arg1: i32) -> (i32, i32) {
    %c0_i32 = arith.constant 0 : i32
    %c0_i32_0 = arith.constant 0 : i32
    return %c0_i32, %arg1 : i32, i32
  }
  func.func @transform_2(%arg0: i32, %arg1: i32) -> (i32, i32) {
    %c0_i32 = arith.constant 0 : i32
    %c0_i32_0 = arith.constant 0 : i32
    %c0_i32_1 = arith.constant 0 : i32
    return %c0_i32, %c0_i32_0 : i32, i32
  }
  func.func @transform_3(%arg0: i32, %arg1: i32) -> (i32, i32) {
    %c0_i32 = arith.constant 0 : i32
    %c0_i32_0 = arith.constant 0 : i32
    return %arg0, %c0_i32 : i32, i32
  }
}

</mosaic_0001>

<llo_original>
// kernel: tpu_custom_call.1
$region0: #{tpu_custom_call.1}
  #allocation0 [shape = 'u32[]', space=smem, size = 0x4, offset = 0x4, fixed_abs, tag = 'smem constant byte address 0x4 - core index']
  #allocation1 [shape = 'u32[144,128]{1,0:T(1,128)}', space=vmem, size = 0x12000, scoped, tag = 'internal scratch']
  %s0 = inlined_call_operand.vmem [shape: bf16[8,32], index: 0, kind: input, shape index: {}]
  %s1 = inlined_call_operand.vmem [shape: bf16[128,32], index: 1, kind: input, shape index: {}]
  %s2 = inlined_call_operand.vmem [shape: f32[1,128], index: 2, kind: input, shape index: {}]
  %s3 = inlined_call_operand.hbm [shape: f32[8,128], index: 3, kind: output, shape index: {}]
  %s4 = sld [smem:[#allocation0]]
  $region30: #{tpu_custom_call.1} parent=0
    _
  %s6 = ssub.s32 1, %s4
  %s7 = scalar_select 0, %s6, %s4
  $region1: #{tpu_custom_call.1} parent=0
    #allocation2 [shape = 'u8[4096]{0}', space=vmem, size = 0x1000, scoped, tag = 'output window, operand 0, single buffered']
    #allocation3 [shape = 's32[1]{0}', space=sflag, size = 0x4, scoped, tag = 'scoped memory for tpu_custom_call.1']
    %8 = vsyncpa [#allocation3], 0
    // Predicated region
    $region2: #{tpu_custom_call.1} parent=1 // pred_check
      _
    $region3: #{tpu_custom_call.1} parent=1 // pred_check_branch
      %10 = sbr.rel (0) target = $region5
    $region4: #{tpu_custom_call.1} parent=1 // pred_region
      _
    $region5: #{tpu_custom_call.1} parent=1 // pred_fallthru
      _
    // Predicated region
    $region6: #{tpu_custom_call.1} parent=1 // pred_check
      _
    $region7: #{tpu_custom_call.1} parent=1 // pred_check_branch
      %12 = sbr.rel (0) target = $region9
    $region8: #{tpu_custom_call.1} parent=1 // pred_region
      _
    $region9: #{tpu_custom_call.1} parent=1 // pred_fallthru
      _
    // Predicated region
    $region10: #{tpu_custom_call.1} parent=1 // pred_check
      _
    $region11: #{tpu_custom_call.1} parent=1 // pred_check_branch
      %14 = sbr.rel (0) target = $region13
    $region12: #{tpu_custom_call.1} parent=1 // pred_region
      _
    $region13: #{tpu_custom_call.1} parent=1 // pred_fallthru
      _
    %p16 = scmp.eq.s32.totalorder 0, 0
    // Predicated region
    $region14: #{tpu_custom_call.1} parent=1 // pred_check
      %p17 = pneg %p16
    $region15: #{tpu_custom_call.1} parent=1 // pred_check_branch
      %19 = sbr.rel (%p17) target = $region17
    $region16: #{tpu_custom_call.1} parent=1 // pred_region
      %20 = vst [vmem:[#allocation2] sm:$0xff] 0.0
    $region17: #{tpu_custom_call.1} parent=1 // pred_fallthru
      _
    %v21 = vld [vmem:[#allocation2] sm:$0xff]
    %v22 = vld [vmem:[%s0] sm:$0xf]
    %v23 = vld [vmem:[%s1] sm:$0xf]
    %v24 = vld [vmem:[%s1 + $0x4] sm:$0xf]
    %v25 = vld [vmem:[%s1 + $0x8] sm:$0xf]
    %v26 = vld [vmem:[%s1 + $0xc] sm:$0xf]
    %v27 = vld [vmem:[%s1 + $0x10] sm:$0xf]
    %v28 = vld [vmem:[%s1 + $0x14] sm:$0xf]
    %v29 = vld [vmem:[%s1 + $0x18] sm:$0xf]
    %v30 = vld [vmem:[%s1 + $0x1c] sm:$0xf]
    %v31 = vld [vmem:[%s1 + $0x20] sm:$0xf]
    %v32 = vld [vmem:[%s1 + $0x24] sm:$0xf]
    %v33 = vld [vmem:[%s1 + $0x28] sm:$0xf]
    %v34 = vld [vmem:[%s1 + $0x2c] sm:$0xf]
    %v35 = vld [vmem:[%s1 + $0x30] sm:$0xf]
    %v36 = vld [vmem:[%s1 + $0x34] sm:$0xf]
    %v37 = vld [vmem:[%s1 + $0x38] sm:$0xf]
    %v38 = vld [vmem:[%s1 + $0x3c] sm:$0xf]
    %v55 = vunpack.c.l.b16 %v23
    %v56 = vunpack.c.l.b16 %v24
    %v57 = vunpack.c.l.b16 %v25
    %v58 = vunpack.c.l.b16 %v26
    %v59 = vunpack.c.l.b16 %v27
    %v60 = vunpack.c.l.b16 %v28
    %v61 = vunpack.c.l.b16 %v29
    %v62 = vunpack.c.l.b16 %v30
    %v63 = vunpack.c.l.b16 %v31
    %v64 = vunpack.c.l.b16 %v32
    %v65 = vunpack.c.l.b16 %v33
    %v66 = vunpack.c.l.b16 %v34
    %v67 = vunpack.c.l.b16 %v35
    %v68 = vunpack.c.l.b16 %v36
    %v69 = vunpack.c.l.b16 %v37
    %v70 = vunpack.c.l.b16 %v38
    %v71 = vpack.c.b16 %v56, %v55
    %v72 = vpack.c.b16 %v58, %v57
    %v73 = vpack.c.b16 %v60, %v59
    %v74 = vpack.c.b16 %v62, %v61
    %v75 = vpack.c.b16 %v64, %v63
    %v76 = vpack.c.b16 %v66, %v65
    %v77 = vpack.c.b16 %v68, %v67
    %v78 = vpack.c.b16 %v70, %v69
    %vm79 = vcmask 261120
    %v81 = vsel %vm79, %v22, 0
    %v84 = vsel %vm79, %v71, 0
    %v87 = vsel %vm79, %v72, 0
    %v90 = vsel %vm79, %v73, 0
    %v93 = vsel %vm79, %v74, 0
    %v96 = vsel %vm79, %v75, 0
    %v99 = vsel %vm79, %v76, 0
    %v102 = vsel %vm79, %v77, 0
    %v105 = vsel %vm79, %v78, 0
    %107 = vmatprep.subr.bf16.mxu0 0
    %108 = vmatpush1.bf16.xpose.msra.mxu0 %v84
    %109 = vmatprep.subr.bf16.mxu0 0
    %110 = vmatpush1.bf16.xpose.msra.mxu0 %v87
    %111 = vmatprep.subr.bf16.mxu0 0
    %112 = vmatpush1.bf16.xpose.msra.mxu0 %v90
    %113 = vmatprep.subr.bf16.mxu0 0
    %114 = vmatpush1.bf16.xpose.msra.mxu0 %v93
    %115 = vmatprep.subr.bf16.mxu0 0
    %116 = vmatpush1.bf16.xpose.msra.mxu0 %v96
    %117 = vmatprep.subr.bf16.mxu0 0
    %118 = vmatpush1.bf16.xpose.msra.mxu0 %v99
    %119 = vmatprep.subr.bf16.mxu0 0
    %120 = vmatpush1.bf16.xpose.msra.mxu0 %v102
    %121 = vmatprep.subr.bf16.mxu0 0
    %122 = vmatpush1.bf16.xpose.msra.mxu0 %v105
    %123 = vmatprep.subr.bf16.mxu0 0
    %124 = vmatpush1.bf16.xpose.msra.mxu0 0
    %125 = vmatprep.subr.bf16.mxu0 0
    %126 = vmatpush1.bf16.xpose.msra.mxu0 0
    %127 = vmatprep.subr.bf16.mxu0 0
    %128 = vmatpush1.bf16.xpose.msra.mxu0 0
    %129 = vmatprep.subr.bf16.mxu0 0
    %130 = vmatpush1.bf16.xpose.msra.mxu0 0
    %131 = vmatprep.subr.bf16.mxu0 0
    %132 = vmatpush1.bf16.xpose.msra.mxu0 0
    %133 = vmatprep.subr.bf16.mxu0 0
    %134 = vmatpush1.bf16.xpose.msra.mxu0 0
    %135 = vmatprep.subr.bf16.mxu0 0
    %136 = vmatpush1.bf16.xpose.msra.mxu0 0
    %137 = vmatprep.subr.bf16.mxu0 0
    %138 = vmatpush1.bf16.xpose.msra.mxu0 0
    %139 = vmatprep.mubr.bf16.mxu0 0
    %140 = vmatmul.mubr.bf16.gmra.mrb[0].mxu0 %v81
    %v141 = vpop.f32.mrb[0].mxu0
    %v142 = vadd.f32 0.0, %v141
    %v143 = vpop.f32.mrb[0].mxu0
    %v144 = vpop.f32.mrb[0].mxu0
    %v145 = vpop.f32.mrb[0].mxu0
    %146 = vdwg.mxu0
    %v147 = vadd.f32 %v21, %v142
    %148 = vst [vmem:[#allocation2] sm:$0xff] %v147
    // Predicated region
    $region18: #{tpu_custom_call.1} parent=1 // pred_check
      %p149 = pneg %p16
    $region19: #{tpu_custom_call.1} parent=1 // pred_check_branch
      %151 = sbr.rel (%p149) target = $region21
    $region20: #{tpu_custom_call.1} parent=1 // pred_region
      %v152 = vld [vmem:[#allocation2] sm:$0xff]
      %v153 = vld [vmem:[%s2] sm:$0x1]
      %v155 = vlaneseq
      %v156 = vshrl.u32 %v155, 7
      %v157 = vsub.s32 0, %v156
      %v158 = vrot.slane %v153, %v157
      %v160 = vadd.f32 %v152, %v158
      %161 = vst [vmem:[#allocation2] sm:$0xff] %v160
    $region21: #{tpu_custom_call.1} parent=1 // pred_fallthru
      _
    // Predicated region
    $region22: #{tpu_custom_call.1} parent=1 // pred_check
      _
    $region23: #{tpu_custom_call.1} parent=1 // pred_check_branch
      %163 = sbr.rel (0) target = $region25
    $region24: #{tpu_custom_call.1} parent=1 // pred_region
      %s165 = ssub.s32 128, 128
      %166 = vsyncadd [#allocation3], %s165
      %s168 = sshll.u32 [#allocation2], 4
      %s169 = int_to_ptr.vmem [resolvable:$true] %s168
      %171 = dma.vmem_to_hbm [thread:$0]  %s169, 128, %s3, [#allocation3]
    $region25: #{tpu_custom_call.1} parent=1 // pred_fallthru
      _
    // Predicated region
    $region26: #{tpu_custom_call.1} parent=1 // pred_check
      _
    $region27: #{tpu_custom_call.1} parent=1 // pred_check_branch
      %173 = sbr.rel (0) target = $region29
    $region28: #{tpu_custom_call.1} parent=1 // pred_region
      %174 = dma.done [#allocation3], 128
    $region29: #{tpu_custom_call.1} parent=1 // pred_fallthru
      _
    %175 = vsyncpa [#allocation3], 1

</llo_original>
